<compile_context>
chip_gen: v7x
topology: tpu7x:2x2x1
jax: 0.10.0
libtpu: 0.0.40
codegen_flags: <defaults>
</compile_context>

<pallas_src>
import functools

import jax
import jax.numpy as jnp
from jax.experimental import pallas as pl
from jax.experimental.pallas import tpu as pltpu


# ----------------------------------------------------------------------------
# small helpers
# ----------------------------------------------------------------------------
def _round_up(x, m):
    return (x + m - 1) // m * m


def _vmem_capacity_bytes():
    try:
        return int(pltpu.get_tpu_info().vmem_capacity_bytes)
    except Exception:
        return 64 * 2 ** 20  # conservative default (v7x)


def _mxu_rows():
    """MXU-native row count: 128 on v5e, 256 on v6e/v7x."""
    try:
        kind = jax.devices()[0].device_kind.lower()
        if "v5 lite" in kind or "v5e" in kind or "v5litepod" in kind:
            return 128
    except Exception:
        pass
    return 256


def _is_v7x():
    try:
        return "v7" in jax.devices()[0].device_kind.lower()
    except Exception:
        return False


def _est_vmem(TB, TN, Dp, Ep, Kp, resident_bufs, out_bytes):
    """VMEM footprint estimate (buffer counts included)."""
    return (
        2 * TB * Dp * 4                 # x tile (f32, double-buffered over i)
        + resident_bufs * Dp * Ep * 2   # W_enc (grid-invariant)
        + 2 * Ep * TN * 2               # W_dec tile (streams over j)
        + resident_bufs * Ep * Kp * 2   # W_cls (grid-invariant)
        + resident_bufs * 8 * Ep * 4    # b_enc (sublane-padded f32)
        + 2 * 8 * TN * 4                # b_dec tile
        + resident_bufs * 8 * Kp * 4    # b_cls
        + 2 * TB * TN * out_bytes       # xhat out tile
        + 2 * TB * Kp * 4               # cls out tile
        + 2 * TB * Ep * 4               # enc out tile
        + TB * Ep * 2                   # bf16 encoding scratch
    )


def _plan_tiles(B, D, E, K, out_bytes):
    """Pick (TB, TN) from the generation's VMEM budget; return padded dims."""
    vmem_cap = _vmem_capacity_bytes()
    budget = int(0.75 * vmem_cap)

    Ep, Kp = _round_up(E, 128), _round_up(K, 128)
    Bp8 = _round_up(max(B, 1), 8)

    # Batch tile: MXU-native rows, balanced over the number of batch tiles.
    tb_cap = _mxu_rows()
    n_btiles = max(1, -(-Bp8 // tb_cap))
    # v7x has 2 TensorCores: make sure the "parallel" batch axis has >= 2 tiles.
    if _is_v7x() and n_btiles < 2 and Bp8 >= 16:
        n_btiles = 2
    TB = _round_up(-(-Bp8 // n_btiles), 8)
    Bp = _round_up(Bp8, TB)
    nB = Bp // TB

    # Decoder-output tile width: largest that fits the budget (>= 128 lanes),
    # padding D up to a multiple of the chosen TN.
    d128 = _round_up(D, 128)
    cands = [t for t in (2048, 1024, 512, 256, 128) if t <= d128]
    TN, Dp, single_buf = None, None, False
    for rb in (2, 1):  # prefer default double-buffering; single-buffer to fit
        for tn in cands:
            dp = _round_up(D, tn)
            if _est_vmem(TB, tn, dp, Ep, Kp, rb, out_bytes) <= budget:
                TN, Dp, single_buf = tn, dp, (rb == 1)
                break
        if TN is not None:
            break
    if TN is None:
        # TODO(synk): for very large D*E (W_enc too big even single-buffered on
        # v7x) split the encoder contraction over an extra "arbitrary" grid
        # axis; for now fall back to minimum tiles.
        TN, Dp, single_buf = 128, _round_up(D, 128), True

    est = _est_vmem(TB, TN, Dp, Ep, Kp, 1 if single_buf else 2, out_bytes)
    vmem_limit = int(min(max(est + est // 4, 32 * 2 ** 20),
                         int(0.92 * vmem_cap)))
    nD = Dp // TN
    return TB, TN, Bp, Dp, Ep, Kp, nB, nD, single_buf, vmem_limit


# ----------------------------------------------------------------------------
# kernel
# ----------------------------------------------------------------------------
def _ae_class_kernel(x_ref, we_ref, be_ref, wd_ref, bd_ref, wc_ref, bc_ref,
                     xhat_ref, cls_ref, enc_ref, enc_bf16):
    """One (batch-tile i, decoder-D-tile j) grid step.

    Grid = (nB, nD) with j innermost and marked "arbitrary": the bf16 encoding
    is carried in a VMEM scratch across the j sweep, and the cls/enc output
    blocks (constant index over j) are written only at j == 0 and flushed when
    the batch tile changes.  Do NOT mark axis 1 "parallel" or reorder the grid.
    """
    j = pl.program_id(1)

    @pl.when(j == 0)
    def _():
        # --- encoder: Linear(D -> E) + ReLU (bf16 MXU, f32 accumulation) ----
        x = x_ref[...].astype(jnp.bfloat16)       # cast in-kernel, hidden by MXU
        enc = jnp.dot(x, we_ref[...], preferred_element_type=jnp.float32)
        enc = jnp.maximum(enc + be_ref[...], 0.0)                  # (TB, Ep) f32
        enc_ref[...] = enc.astype(enc_ref.dtype)
        enc_b = enc.astype(jnp.bfloat16)
        enc_bf16[...] = enc_b                      # cached once per batch tile

        # --- classifier: Linear(E -> K) --------------------------------------
        logits = jnp.dot(enc_b, wc_ref[...], preferred_element_type=jnp.float32)
        cls_ref[...] = (logits + bc_ref[...]).astype(cls_ref.dtype)

    # --- decoder: Linear(E -> D), one lane-dense (TB, TN) slab per j step ----
    xhat = jnp.dot(enc_bf16[...], wd_ref[...], preferred_element_type=jnp.float32)
    xhat_ref[...] = (xhat + bd_ref[...]).astype(xhat_ref.dtype)


# ----------------------------------------------------------------------------
# builder: pads/casts params ONCE and returns a jitted forward
# ----------------------------------------------------------------------------
def make_ae_and_class_forward(params, *, batch_size, channels, length,
                              out_dtype=jnp.float32):
    C, L = channels, length
    D = C * L
    E = params["W_enc"].shape[1]
    K = params["W_cls"].shape[1]
    out_bytes = jnp.dtype(out_dtype).itemsize

    (TB, TN, Bp, Dp, Ep, Kp, nB, nD,
     single_buf, vmem_limit) = _plan_tiles(batch_size, D, E, K, out_bytes)

    bf16, f32 = jnp.bfloat16, jnp.float32

    # ---- one-time pad + cast of the parameters (hoisted out of forward) -----
    we_p = jnp.zeros((Dp, Ep), bf16).at[:D, :E].set(params["W_enc"].astype(bf16))
    wd_p = jnp.zeros((Ep, Dp), bf16).at[:E, :D].set(params["W_dec"].astype(bf16))
    wc_p = jnp.zeros((Ep, Kp), bf16).at[:E, :K].set(params["W_cls"].astype(bf16))
    be_p = jnp.zeros((1, Ep), f32).at[:, :E].set(params["b_enc"].reshape(1, E).astype(f32))
    bd_p = jnp.zeros((1, Dp), f32).at[:, :D].set(params["b_dec"].reshape(1, D).astype(f32))
    bc_p = jnp.zeros((1, Kp), f32).at[:, :K].set(params["b_cls"].reshape(1, K).astype(f32))
    weights = (we_p, be_p, wd_p, bd_p, wc_p, bc_p)

    # ---- BlockSpecs ----------------------------------------------------------
    def _resident_spec(shape):
        # grid-invariant operand: single-buffer it when VMEM is tight (v7x)
        if single_buf:
            return pl.BlockSpec(shape, lambda i, j: (0, 0),
                                pipeline_mode=pl.Buffered(1))
        return pl.BlockSpec(shape, lambda i, j: (0, 0))

    in_specs = [
        pl.BlockSpec((TB, Dp), lambda i, j: (i, 0)),    # x tile
        _resident_spec((Dp, Ep)),                       # W_enc
        _resident_spec((1, Ep)),                        # b_enc
        pl.BlockSpec((Ep, TN), lambda i, j: (0, j)),    # W_dec tile
        pl.BlockSpec((1, TN), lambda i, j: (0, j)),     # b_dec tile
        _resident_spec((Ep, Kp)),                       # W_cls
        _resident_spec((1, Kp)),                        # b_cls
    ]
    out_specs = (
        pl.BlockSpec((TB, TN), lambda i, j: (i, j)),    # xhat
        pl.BlockSpec((TB, Kp), lambda i, j: (i, 0)),    # logits
        pl.BlockSpec((TB, Ep), lambda i, j: (i, 0)),    # encoding
    )

    flops = 4 * batch_size * D * E + 2 * batch_size * E * K
    bytes_accessed = (Bp * Dp * 4                       # x read
                      + (Dp * Ep + Ep * Dp + Ep * Kp) * 2   # weights read
                      + Bp * Dp * out_bytes + Bp * Kp * 4 + Bp * Ep * 4)

    call = pl.pallas_call(
        _ae_class_kernel,
        out_shape=(
            jax.ShapeDtypeStruct((Bp, Dp), out_dtype),  # xhat (flattened, padded)
            jax.ShapeDtypeStruct((Bp, Kp), f32),        # classifier logits
            jax.ShapeDtypeStruct((Bp, Ep), f32),        # encoding
        ),
        grid=(nB, nD),
        in_specs=in_specs,
        out_specs=out_specs,
        scratch_shapes=[pltpu.VMEM((TB, Ep), jnp.bfloat16)],
        compiler_params=pltpu.CompilerParams(
            dimension_semantics=("parallel", "arbitrary"),
            vmem_limit_bytes=vmem_limit,
        ),
        cost_estimate=pl.CostEstimate(
            flops=int(flops), transcendentals=0,
            bytes_accessed=int(bytes_accessed)),
    )

    def _fwd(x, w):
        we, be, wd, bd, wc, bc = w
        B = x.shape[0]
        xf = x.reshape(B, D)
        if (B, D) != (Bp, Dp):
            # pad only the ragged tail (no full re-copy in the aligned case)
            xf = jnp.pad(xf, ((0, Bp - B), (0, Dp - D)))
        xhat_p, cls_p, enc_p = call(xf, we, be, wd, bd, wc, bc)
        xhat = xhat_p[:B, :D].reshape(B, C, L)          # decoder(x_enc)
        x_out = cls_p[:B, :K]                           # classifier(x_enc.squeeze(-1))
        x_enc = enc_p[:B, :E].reshape(B, E, 1)          # encoder(x)
        return xhat, x_out, x_enc

    fwd = jax.jit(_fwd)

    def forward(x):
        assert x.shape == (batch_size, C, L), (x.shape, (batch_size, C, L))
        return fwd(x, weights)

    return forward


# ----------------------------------------------------------------------------
# params / reference / main
# ----------------------------------------------------------------------------
def init_params(key, C, L, E, K):
    D = C * L
    k = jax.random.split(key, 6)
    scale_e = 1.0 / jnp.sqrt(D)
    scale_d = 1.0 / jnp.sqrt(E)
    return {
        "W_enc": jax.random.normal(k[0], (D, E), jnp.float32) * scale_e,
        "b_enc": jax.random.normal(k[1], (1, E), jnp.float32) * 0.01,
        "W_dec": jax.random.normal(k[2], (E, D), jnp.float32) * scale_d,
        "b_dec": jax.random.normal(k[3], (1, D), jnp.float32) * 0.01,
        "W_cls": jax.random.normal(k[4], (E, K), jnp.float32) * scale_d,
        "b_cls": jax.random.normal(k[5], (1, K), jnp.float32) * 0.01,
    }


def _reference(x, p):
    """Pure-JAX f32 reference of the same forward (for a correctness check)."""
    B, C, L = x.shape
    xf = x.reshape(B, -1)
    enc = jnp.maximum(xf @ p["W_enc"] + p["b_enc"], 0.0)
    xhat = (enc @ p["W_dec"] + p["b_dec"]).reshape(B, C, L)
    out = enc @ p["W_cls"] + p["b_cls"]
    return xhat, out, enc.reshape(B, enc.shape[1], 1)


if __name__ == "__main__":
    B, C, L = 2, 4, 16      # batch, channels, sequence length (NCL)
    E, K = 32, 3            # embedding dim, num classes

    key = jax.random.PRNGKey(0)
    kx, kp = jax.random.split(key)
    x = jax.random.normal(kx, (B, C, L), jnp.float32)
    params = init_params(kp, C, L, E, K)

    forward = make_ae_and_class_forward(
        params, batch_size=B, channels=C, length=L, out_dtype=jnp.float32)

    xhat, x_out, x_enc = jax.block_until_ready(forward(x))

    # sanity check against pure-JAX f32 reference (bf16 MXU operands with f32
    # accumulation in the kernel loosen the tolerance to ~2e-2).
    r_xhat, r_out, r_enc = _reference(x, params)
    assert xhat.shape == (B, C, L) and x_out.shape == (B, K) and x_enc.shape == (B, E, 1)
    assert jnp.allclose(xhat, r_xhat, atol=2e-2, rtol=2e-2)
    assert jnp.allclose(x_out, r_out, atol=2e-2, rtol=2e-2)
    assert jnp.allclose(x_enc, r_enc, atol=2e-2, rtol=2e-2)

    print("KERNEL_OK")
</pallas_src>

<mosaic_0001>
module attributes {stable_mosaic.version = 11 : i64} {
  func.func @_ae_class_kernel(%arg0: i32, %arg1: i32, %arg2: memref<8x128xf32, #tpu.memory_space<vmem>>, %arg3: memref<128x128xbf16, #tpu.memory_space<vmem>>, %arg4: memref<1x128xf32, #tpu.memory_space<vmem>>, %arg5: memref<128x128xbf16, #tpu.memory_space<vmem>>, %arg6: memref<1x128xf32, #tpu.memory_space<vmem>>, %arg7: memref<128x128xbf16, #tpu.memory_space<vmem>>, %arg8: memref<1x128xf32, #tpu.memory_space<vmem>>, %arg9: memref<8x128xf32, #tpu.memory_space<vmem>>, %arg10: memref<8x128xf32, #tpu.memory_space<vmem>>, %arg11: memref<8x128xf32, #tpu.memory_space<vmem>>, %arg12: memref<8x128xbf16, #tpu.memory_space<vmem>>) attributes {dimension_semantics = [#tpu.dimension_semantics<parallel>, #tpu.dimension_semantics<arbitrary>], iteration_bounds = array<i64: 1, 1>, scalar_prefetch = 0 : i64, scratch_operands = 1 : i64, tpu.core_type = #tpu.core_type<tc>, window_params = [{transform_indices = @transform_0, window_bounds = array<i64: 8, 128>}, {pipeline_mode = #tpu.pipeline_mode<synchronous>, transform_indices = @transform_1, window_bounds = array<i64: 128, 128>}, {pipeline_mode = #tpu.pipeline_mode<synchronous>, transform_indices = @transform_2, window_bounds = array<i64: 1, 128>}, {transform_indices = @transform_3, window_bounds = array<i64: 128, 128>}, {transform_indices = @transform_4, window_bounds = array<i64: 1, 128>}, {pipeline_mode = #tpu.pipeline_mode<synchronous>, transform_indices = @transform_5, window_bounds = array<i64: 128, 128>}, {pipeline_mode = #tpu.pipeline_mode<synchronous>, transform_indices = @transform_6, window_bounds = array<i64: 1, 128>}, {transform_indices = @transform_7, window_bounds = array<i64: 8, 128>}, {transform_indices = @transform_8, window_bounds = array<i64: 8, 128>}, {transform_indices = @transform_9, window_bounds = array<i64: 8, 128>}]} {
    %c0_i32 = arith.constant 0 : i32
    %0 = arith.cmpi eq, %arg1, %c0_i32 : i32
    %1 = arith.extui %0 : i1 to i32
    %c0_i32_0 = arith.constant 0 : i32
    %2 = arith.cmpi ne, %1, %c0_i32_0 : i32
    scf.if %2 {
      %c0_8 = arith.constant 0 : index
      %c0_9 = arith.constant 0 : index
      %10 = vector.load %arg2[%c0_8, %c0_9] : memref<8x128xf32, #tpu.memory_space<vmem>>, vector<8x128xf32>
      %11 = arith.truncf %10 : vector<8x128xf32> to vector<8x128xbf16>
      %c0_10 = arith.constant 0 : index
      %c0_11 = arith.constant 0 : index
      %12 = vector.load %arg3[%c0_10, %c0_11] : memref<128x128xbf16, #tpu.memory_space<vmem>>, vector<128x128xbf16>
      %cst_12 = arith.constant dense<0.000000e+00> : vector<8x128xf32>
      %13 = tpu.matmul %11, %12, %cst_12 {dimension_numbers = #tpu.dot_dimension_numbers<[1], [0], [0], [1], [0, 0, 1, 1], [], []>} : vector<8x128xbf16>, vector<128x128xbf16>, vector<8x128xf32> -> vector<8x128xf32>
      %c0_13 = arith.constant 0 : index
      %c0_14 = arith.constant 0 : index
      %14 = vector.load %arg4[%c0_13, %c0_14] : memref<1x128xf32, #tpu.memory_space<vmem>>, vector<1x128xf32>
      %15 = vector.broadcast %14 : vector<1x128xf32> to vector<8x128xf32>
      %16 = arith.addf %13, %15 : vector<8x128xf32>
      %cst_15 = arith.constant 0.000000e+00 : f32
      %17 = vector.broadcast %cst_15 : f32 to vector<8x128xf32>
      %18 = arith.maximumf %16, %17 : vector<8x128xf32>
      %c0_16 = arith.constant 0 : index
      %c0_17 = arith.constant 0 : index
      %19 = vector.load %arg11[%c0_16, %c0_17] : memref<8x128xf32, #tpu.memory_space<vmem>>, vector<8x128xf32>
      tpu.vector_store %arg11[%c0_16, %c0_17], %18 {strides = array<i32>} : memref<8x128xf32, #tpu.memory_space<vmem>>, vector<8x128xf32>,
      %20 = arith.truncf %18 : vector<8x128xf32> to vector<8x128xbf16>
      %c0_18 = arith.constant 0 : index
      %c0_19 = arith.constant 0 : index
      %21 = vector.load %arg12[%c0_18, %c0_19] : memref<8x128xbf16, #tpu.memory_space<vmem>>, vector<8x128xbf16>
      tpu.vector_store %arg12[%c0_18, %c0_19], %20 {strides = array<i32>} : memref<8x128xbf16, #tpu.memory_space<vmem>>, vector<8x128xbf16>,
      %c0_20 = arith.constant 0 : index
      %c0_21 = arith.constant 0 : index
      %22 = vector.load %arg7[%c0_20, %c0_21] : memref<128x128xbf16, #tpu.memory_space<vmem>>, vector<128x128xbf16>
      %cst_22 = arith.constant dense<0.000000e+00> : vector<8x128xf32>
      %23 = tpu.matmul %20, %22, %cst_22 {dimension_numbers = #tpu.dot_dimension_numbers<[1], [0], [0], [1], [0, 0, 1, 1], [], []>} : vector<8x128xbf16>, vector<128x128xbf16>, vector<8x128xf32> -> vector<8x128xf32>
      %c0_23 = arith.constant 0 : index
      %c0_24 = arith.constant 0 : index
      %24 = vector.load %arg8[%c0_23, %c0_24] : memref<1x128xf32, #tpu.memory_space<vmem>>, vector<1x128xf32>
      %25 = vector.broadcast %24 : vector<1x128xf32> to vector<8x128xf32>
      %26 = arith.addf %23, %25 : vector<8x128xf32>
      %c0_25 = arith.constant 0 : index
      %c0_26 = arith.constant 0 : index
      %27 = vector.load %arg10[%c0_25, %c0_26] : memref<8x128xf32, #tpu.memory_space<vmem>>, vector<8x128xf32>
      tpu.vector_store %arg10[%c0_25, %c0_26], %26 {strides = array<i32>} : memref<8x128xf32, #tpu.memory_space<vmem>>, vector<8x128xf32>,
    } else {
    }
    %c0 = arith.constant 0 : index
    %c0_1 = arith.constant 0 : index
    %3 = vector.load %arg12[%c0, %c0_1] : memref<8x128xbf16, #tpu.memory_space<vmem>>, vector<8x128xbf16>
    %c0_2 = arith.constant 0 : index
    %c0_3 = arith.constant 0 : index
    %4 = vector.load %arg5[%c0_2, %c0_3] : memref<128x128xbf16, #tpu.memory_space<vmem>>, vector<128x128xbf16>
    %cst = arith.constant dense<0.000000e+00> : vector<8x128xf32>
    %5 = tpu.matmul %3, %4, %cst {dimension_numbers = #tpu.dot_dimension_numbers<[1], [0], [0], [1], [0, 0, 1, 1], [], []>} : vector<8x128xbf16>, vector<128x128xbf16>, vector<8x128xf32> -> vector<8x128xf32>
    %c0_4 = arith.constant 0 : index
    %c0_5 = arith.constant 0 : index
    %6 = vector.load %arg6[%c0_4, %c0_5] : memref<1x128xf32, #tpu.memory_space<vmem>>, vector<1x128xf32>
    %7 = vector.broadcast %6 : vector<1x128xf32> to vector<8x128xf32>
    %8 = arith.addf %5, %7 : vector<8x128xf32>
    %c0_6 = arith.constant 0 : index
    %c0_7 = arith.constant 0 : index
    %9 = vector.load %arg9[%c0_6, %c0_7] : memref<8x128xf32, #tpu.memory_space<vmem>>, vector<8x128xf32>
    tpu.vector_store %arg9[%c0_6, %c0_7], %8 {strides = array<i32>} : memref<8x128xf32, #tpu.memory_space<vmem>>, vector<8x128xf32>,
    return
  }
  func.func @transform_0(%arg0: i32, %arg1: i32) -> (i32, i32) {
    %c0_i32 = arith.constant 0 : i32
    %c0_i32_0 = arith.constant 0 : i32
    return %arg0, %c0_i32 : i32, i32
  }
  func.func @transform_1(%arg0: i32, %arg1: i32) -> (i32, i32) {
    %c0_i32 = arith.constant 0 : i32
    %c0_i32_0 = arith.constant 0 : i32
    %c0_i32_1 = arith.constant 0 : i32
    return %c0_i32, %c0_i32_0 : i32, i32
  }
  func.func @transform_2(%arg0: i32, %arg1: i32) -> (i32, i32) {
    %c0_i32 = arith.constant 0 : i32
    %c0_i32_0 = arith.constant 0 : i32
    %c0_i32_1 = arith.constant 0 : i32
    return %c0_i32, %c0_i32_0 : i32, i32
  }
  func.func @transform_3(%arg0: i32, %arg1: i32) -> (i32, i32) {
    %c0_i32 = arith.constant 0 : i32
    %c0_i32_0 = arith.constant 0 : i32
    return %c0_i32, %arg1 : i32, i32
  }
  func.func @transform_4(%arg0: i32, %arg1: i32) -> (i32, i32) {
    %c0_i32 = arith.constant 0 : i32
    %c0_i32_0 = arith.constant 0 : i32
    return %c0_i32, %arg1 : i32, i32
  }
  func.func @transform_5(%arg0: i32, %arg1: i32) -> (i32, i32) {
    %c0_i32 = arith.constant 0 : i32
    %c0_i32_0 = arith.constant 0 : i32
    %c0_i32_1 = arith.constant 0 : i32
    return %c0_i32, %c0_i32_0 : i32, i32
  }
  func.func @transform_6(%arg0: i32, %arg1: i32) -> (i32, i32) {
    %c0_i32 = arith.constant 0 : i32
    %c0_i32_0 = arith.constant 0 : i32
    %c0_i32_1 = arith.constant 0 : i32
    return %c0_i32, %c0_i32_0 : i32, i32
  }
  func.func @transform_7(%arg0: i32, %arg1: i32) -> (i32, i32) {
    %c0_i32 = arith.constant 0 : i32
    return %arg0, %arg1 : i32, i32
  }
  func.func @transform_8(%arg0: i32, %arg1: i32) -> (i32, i32) {
    %c0_i32 = arith.constant 0 : i32
    %c0_i32_0 = arith.constant 0 : i32
    return %arg0, %c0_i32 : i32, i32
  }
  func.func @transform_9(%arg0: i32, %arg1: i32) -> (i32, i32) {
    %c0_i32 = arith.constant 0 : i32
    %c0_i32_0 = arith.constant 0 : i32
    return %arg0, %c0_i32 : i32, i32
  }
}

</mosaic_0001>

<llo_original>
// kernel: _fwd.1
$region0: #{_fwd.1}
  #allocation0 [shape = 'u32[]', space=smem, size = 0x4, offset = 0x4, fixed_abs, tag = 'smem constant byte address 0x4 - core index']
  #allocation1 [shape = 'u32[144,128]{1,0:T(1,128)}', space=vmem, size = 0x12000, scoped, tag = 'internal scratch']
  #allocation2 [shape = 'bf16[8,128]{1,0:T(8,128)(2,1)}', space=vmem, size = 0x800, scoped, tag = 'scratch operand']
  %s0 = inlined_call_operand.vmem [shape: f32[8,128], index: 0, kind: input, shape index: {}]
  %s1 = inlined_call_operand.hbm [shape: bf16[128,128], index: 1, kind: input, shape index: {}]
  %s2 = inlined_call_operand.vmem [shape: f32[1,128], index: 2, kind: input, shape index: {}]
  %s3 = inlined_call_operand.hbm [shape: bf16[128,128], index: 3, kind: input, shape index: {}]
  %s4 = inlined_call_operand.vmem [shape: f32[1,128], index: 4, kind: input, shape index: {}]
  %s5 = inlined_call_operand.hbm [shape: bf16[128,128], index: 5, kind: input, shape index: {}]
  %s6 = inlined_call_operand.vmem [shape: f32[1,128], index: 6, kind: input, shape index: {}]
  %s7 = inlined_call_operand.vmem [shape: f32[8,128], index: 7, kind: output, shape index: {0}]
  %s8 = inlined_call_operand.vmem [shape: f32[8,128], index: 8, kind: output, shape index: {1}]
  %s9 = inlined_call_operand.vmem [shape: f32[8,128], index: 9, kind: output, shape index: {2}]
  %10 = xla_tuple %s7, %s8, %s9
  %s11 = sld [smem:[#allocation0]]
  $region70: #{_fwd.1} parent=0
    _
  %s13 = ssub.s32 1, %s11
  %s14 = scalar_select 0, %s13, %s11
  $region1: #{_fwd.1} parent=0
    #allocation3 [shape = 'u8[32768]{0}', space=vmem, size = 0x8000, scoped, tag = 'input window, operand 1, single buffered']
    #allocation4 [shape = 's32[1]{0}', space=sflag, size = 0x4, scoped, tag = 'scoped memory for _fwd.1']
    #allocation5 [shape = 'u8[32768]{0}', space=vmem, size = 0x8000, scoped, tag = 'input window, operand 3, single buffered']
    #allocation6 [shape = 's32[1]{0}', space=sflag, size = 0x4, scoped, tag = 'scoped memory for _fwd.1']
    #allocation7 [shape = 'u8[32768]{0}', space=vmem, size = 0x8000, scoped, tag = 'input window, operand 5, single buffered']
    %15 = vsyncpa [#allocation4], 0
    %16 = vsyncpa [#allocation6], 0
    // Predicated region
    $region2: #{_fwd.1} parent=1 // pred_check
      _
    $region3: #{_fwd.1} parent=1 // pred_check_branch
      %18 = sbr.rel (0) target = $region5
    $region4: #{_fwd.1} parent=1 // pred_region
      _
    $region5: #{_fwd.1} parent=1 // pred_fallthru
      _
    // Predicated region
    $region6: #{_fwd.1} parent=1 // pred_check
      _
    $region7: #{_fwd.1} parent=1 // pred_check_branch
      %20 = sbr.rel (0) target = $region9
    $region8: #{_fwd.1} parent=1 // pred_region
      %s22 = ssub.s32 1024, 1024
      %23 = vsyncadd [#allocation4], %s22
      %s24 = sshll.u32 [#allocation3], 4
      %s25 = int_to_ptr.vmem [resolvable:$true] %s24
      %30 = dma.hbm_to_vmem [thread:$0]  %s1, 1024, %s25, [#allocation4], 64, 64, 4
    $region9: #{_fwd.1} parent=1 // pred_fallthru
      _
    // Predicated region
    $region10: #{_fwd.1} parent=1 // pred_check
      _
    $region11: #{_fwd.1} parent=1 // pred_check_branch
      %32 = sbr.rel (0) target = $region13
    $region12: #{_fwd.1} parent=1 // pred_region
      _
    $region13: #{_fwd.1} parent=1 // pred_fallthru
      _
    // Predicated region
    $region14: #{_fwd.1} parent=1 // pred_check
      _
    $region15: #{_fwd.1} parent=1 // pred_check_branch
      %34 = sbr.rel (0) target = $region17
    $region16: #{_fwd.1} parent=1 // pred_region
      %s36 = ssub.s32 1024, 1024
      %37 = vsyncadd [#allocation6], %s36
      %s38 = sshll.u32 [#allocation5], 4
      %s39 = int_to_ptr.vmem [resolvable:$true] %s38
      %44 = dma.hbm_to_vmem [thread:$0]  %s3, 1024, %s39, [#allocation6], 64, 64, 4
    $region17: #{_fwd.1} parent=1 // pred_fallthru
      _
    // Predicated region
    $region18: #{_fwd.1} parent=1 // pred_check
      _
    $region19: #{_fwd.1} parent=1 // pred_check_branch
      %46 = sbr.rel (0) target = $region21
    $region20: #{_fwd.1} parent=1 // pred_region
      _
    $region21: #{_fwd.1} parent=1 // pred_fallthru
      _
    // Predicated region
    $region22: #{_fwd.1} parent=1 // pred_check
      _
    $region23: #{_fwd.1} parent=1 // pred_check_branch
      %48 = sbr.rel (0) target = $region25
    $region24: #{_fwd.1} parent=1 // pred_region
      %s50 = ssub.s32 1024, 1024
      %51 = vsyncadd [#allocation6], %s50
      %s52 = sshll.u32 [#allocation7], 4
      %s53 = int_to_ptr.vmem [resolvable:$true] %s52
      %58 = dma.hbm_to_vmem [thread:$0]  %s5, 1024, %s53, [#allocation6], 64, 64, 4
    $region25: #{_fwd.1} parent=1 // pred_fallthru
      _
    // Predicated region
    $region26: #{_fwd.1} parent=1 // pred_check
      _
    $region27: #{_fwd.1} parent=1 // pred_check_branch
      %60 = sbr.rel (0) target = $region29
    $region28: #{_fwd.1} parent=1 // pred_region
      _
    $region29: #{_fwd.1} parent=1 // pred_fallthru
      _
    // Predicated region
    $region30: #{_fwd.1} parent=1 // pred_check
      _
    $region31: #{_fwd.1} parent=1 // pred_check_branch
      %62 = sbr.rel (0) target = $region33
    $region32: #{_fwd.1} parent=1 // pred_region
      %63 = dma.done [#allocation4], 1024
    $region33: #{_fwd.1} parent=1 // pred_fallthru
      _
    // Predicated region
    $region34: #{_fwd.1} parent=1 // pred_check
      _
    $region35: #{_fwd.1} parent=1 // pred_check_branch
      %65 = sbr.rel (0) target = $region37
    $region36: #{_fwd.1} parent=1 // pred_region
      %66 = dma.done [#allocation6], 1024
    $region37: #{_fwd.1} parent=1 // pred_fallthru
      _
    // Predicated region
    $region38: #{_fwd.1} parent=1 // pred_check
      _
    $region39: #{_fwd.1} parent=1 // pred_check_branch
      %68 = sbr.rel (0) target = $region41
    $region40: #{_fwd.1} parent=1 // pred_region
      %69 = dma.done [#allocation6], 1024
    $region41: #{_fwd.1} parent=1 // pred_fallthru
      _
    %p71 = scmp.eq.s32.totalorder 0, 0
    // Predicated region
    $region42: #{_fwd.1} parent=1 // pred_check
      %p72 = pneg %p71
    $region43: #{_fwd.1} parent=1 // pred_check_branch
      %74 = sbr.rel (%p72) target = $region45
    $region44: #{_fwd.1} parent=1 // pred_region
      %v75 = vld [vmem:[%s0] sm:$0xff]
      %v76 = vpack.c.bf16 %v75, %v75
      %v77 = vld [vmem:[#allocation3] sm:$0xf]
      %v78 = vld [vmem:[#allocation3 + $0x4] sm:$0xf]
      %v79 = vld [vmem:[#allocation3 + $0x8] sm:$0xf]
      %v80 = vld [vmem:[#allocation3 + $0xc] sm:$0xf]
      %v81 = vld [vmem:[#allocation3 + $0x10] sm:$0xf]
      %v82 = vld [vmem:[#allocation3 + $0x14] sm:$0xf]
      %v83 = vld [vmem:[#allocation3 + $0x18] sm:$0xf]
      %v84 = vld [vmem:[#allocation3 + $0x1c] sm:$0xf]
      %v85 = vld [vmem:[#allocation3 + $0x20] sm:$0xf]
      %v86 = vld [vmem:[#allocation3 + $0x24] sm:$0xf]
      %v87 = vld [vmem:[#allocation3 + $0x28] sm:$0xf]
      %v88 = vld [vmem:[#allocation3 + $0x2c] sm:$0xf]
      %v89 = vld [vmem:[#allocation3 + $0x30] sm:$0xf]
      %v90 = vld [vmem:[#allocation3 + $0x34] sm:$0xf]
      %v91 = vld [vmem:[#allocation3 + $0x38] sm:$0xf]
      %v92 = vld [vmem:[#allocation3 + $0x3c] sm:$0xf]
      %v93 = vld [vmem:[%s2] sm:$0x1]
      %v95 = vlaneseq
      %v96 = vshrl.u32 %v95, 7
      %v97 = vsub.s32 0, %v96
      %v98 = vrot.slane %v93, %v97
      %v116 = vunpack.c.l.b16 %v77
      %v117 = vunpack.c.l.b16 %v78
      %v118 = vunpack.c.l.b16 %v79
      %v119 = vunpack.c.l.b16 %v80
      %v120 = vunpack.c.l.b16 %v81
      %v121 = vunpack.c.l.b16 %v82
      %v122 = vunpack.c.l.b16 %v83
      %v123 = vunpack.c.l.b16 %v84
      %v124 = vunpack.c.l.b16 %v85
      %v125 = vunpack.c.l.b16 %v86
      %v126 = vunpack.c.l.b16 %v87
      %v127 = vunpack.c.l.b16 %v88
      %v128 = vunpack.c.l.b16 %v89
      %v129 = vunpack.c.l.b16 %v90
      %v130 = vunpack.c.l.b16 %v91
      %v131 = vunpack.c.l.b16 %v92
      %v132 = vpack.c.b16 %v117, %v116
      %v133 = vpack.c.b16 %v119, %v118
      %v134 = vpack.c.b16 %v121, %v120
      %v135 = vpack.c.b16 %v123, %v122
      %v136 = vpack.c.b16 %v125, %v124
      %v137 = vpack.c.b16 %v127, %v126
      %v138 = vpack.c.b16 %v129, %v128
      %v139 = vpack.c.b16 %v131, %v130
      %148 = vmatprep.subr.bf16.mxu0 0
      %149 = vmatpush1.bf16.msra.mxu0 %v132
      %150 = vmatprep.subr.bf16.mxu0 0
      %151 = vmatpush1.bf16.msra.mxu0 %v133
      %152 = vmatprep.subr.bf16.mxu0 0
      %153 = vmatpush1.bf16.msra.mxu0 %v134
      %154 = vmatprep.subr.bf16.mxu0 0
      %155 = vmatpush1.bf16.msra.mxu0 %v135
      %156 = vmatprep.subr.bf16.mxu0 0
      %157 = vmatpush1.bf16.msra.mxu0 %v136
      %158 = vmatprep.subr.bf16.mxu0 0
      %159 = vmatpush1.bf16.msra.mxu0 %v137
      %160 = vmatprep.subr.bf16.mxu0 0
      %161 = vmatpush1.bf16.msra.mxu0 %v138
      %162 = vmatprep.subr.bf16.mxu0 0
      %163 = vmatpush1.bf16.msra.mxu0 %v139
      %164 = vmatprep.subr.bf16.mxu0 0
      %165 = vmatpush1.bf16.msra.mxu0 0
      %166 = vmatprep.subr.bf16.mxu0 0
      %167 = vmatpush1.bf16.msra.mxu0 0
      %168 = vmatprep.subr.bf16.mxu0 0
      %169 = vmatpush1.bf16.msra.mxu0 0
      %170 = vmatprep.subr.bf16.mxu0 0
      %171 = vmatpush1.bf16.msra.mxu0 0
      %172 = vmatprep.subr.bf16.mxu0 0
      %173 = vmatpush1.bf16.msra.mxu0 0
      %174 = vmatprep.subr.bf16.mxu0 0
      %175 = vmatpush1.bf16.msra.mxu0 0
      %176 = vmatprep.subr.bf16.mxu0 0
      %177 = vmatpush1.bf16.msra.mxu0 0
      %178 = vmatprep.subr.bf16.mxu0 0
      %179 = vmatpush1.bf16.msra.mxu0 0
      %180 = vmatprep.mubr.bf16.mxu0 0
      %181 = vmatmul.mubr.bf16.gmra.mrb[0].mxu0 %v76
      %v182 = vpop.f32.mrb[0].mxu0
      %v183 = vadd.f32 %v98, %v182
      %v184 = vpop.f32.mrb[0].mxu0
      %v185 = vpop.f32.mrb[0].mxu0
      %v186 = vpop.f32.mrb[0].mxu0
      %187 = vdwg.mxu0
      %v188 = vmax.f32 %v183, 0.0
      %189 = vst [vmem:[%s9] sm:$0xff] %v188
      %v190 = vpack.c.bf16 %v188, %v188
      %191 = vst [vmem:[#allocation2] sm:$0xf] %v190
      %v192 = vld [vmem:[#allocation7] sm:$0xf]
      %v193 = vld [vmem:[#allocation7 + $0x4] sm:$0xf]
      %v194 = vld [vmem:[#allocation7 + $0x8] sm:$0xf]
      %v195 = vld [vmem:[#allocation7 + $0xc] sm:$0xf]
      %v196 = vld [vmem:[#allocation7 + $0x10] sm:$0xf]
      %v197 = vld [vmem:[#allocation7 + $0x14] sm:$0xf]
      %v198 = vld [vmem:[#allocation7 + $0x18] sm:$0xf]
      %v199 = vld [vmem:[#allocation7 + $0x1c] sm:$0xf]
      %v200 = vld [vmem:[#allocation7 + $0x20] sm:$0xf]
      %v201 = vld [vmem:[#allocation7 + $0x24] sm:$0xf]
      %v202 = vld [vmem:[#allocation7 + $0x28] sm:$0xf]
      %v203 = vld [vmem:[#allocation7 + $0x2c] sm:$0xf]
      %v204 = vld [vmem:[#allocation7 + $0x30] sm:$0xf]
      %v205 = vld [vmem:[#allocation7 + $0x34] sm:$0xf]
      %v206 = vld [vmem:[#allocation7 + $0x38] sm:$0xf]
      %v207 = vld [vmem:[#allocation7 + $0x3c] sm:$0xf]
      %v208 = vld [vmem:[%s6] sm:$0x1]
      %v210 = vlaneseq
      %v211 = vshrl.u32 %v210, 7
      %v212 = vsub.s32 0, %v211
      %v213 = vrot.slane %v208, %v212
      %v231 = vunpack.c.l.b16 %v192
      %v232 = vunpack.c.l.b16 %v193
      %v233 = vunpack.c.l.b16 %v194
      %v234 = vunpack.c.l.b16 %v195
      %v235 = vunpack.c.l.b16 %v196
      %v236 = vunpack.c.l.b16 %v197
      %v237 = vunpack.c.l.b16 %v198
      %v238 = vunpack.c.l.b16 %v199
      %v239 = vunpack.c.l.b16 %v200
      %v240 = vunpack.c.l.b16 %v201
      %v241 = vunpack.c.l.b16 %v202
      %v242 = vunpack.c.l.b16 %v203
      %v243 = vunpack.c.l.b16 %v204
      %v244 = vunpack.c.l.b16 %v205
      %v245 = vunpack.c.l.b16 %v206
      %v246 = vunpack.c.l.b16 %v207
      %v247 = vpack.c.b16 %v232, %v231
      %v248 = vpack.c.b16 %v234, %v233
      %v249 = vpack.c.b16 %v236, %v235
      %v250 = vpack.c.b16 %v238, %v237
      %v251 = vpack.c.b16 %v240, %v239
      %v252 = vpack.c.b16 %v242, %v241
      %v253 = vpack.c.b16 %v244, %v243
      %v254 = vpack.c.b16 %v246, %v245
      %263 = vmatprep.subr.bf16.mxu0 0
      %264 = vmatpush1.bf16.msra.mxu0 %v247
      %265 = vmatprep.subr.bf16.mxu0 0
      %266 = vmatpush1.bf16.msra.mxu0 %v248
      %267 = vmatprep.subr.bf16.mxu0 0
      %268 = vmatpush1.bf16.msra.mxu0 %v249
      %269 = vmatprep.subr.bf16.mxu0 0
      %270 = vmatpush1.bf16.msra.mxu0 %v250
      %271 = vmatprep.subr.bf16.mxu0 0
      %272 = vmatpush1.bf16.msra.mxu0 %v251
      %273 = vmatprep.subr.bf16.mxu0 0
      %274 = vmatpush1.bf16.msra.mxu0 %v252
      %275 = vmatprep.subr.bf16.mxu0 0
      %276 = vmatpush1.bf16.msra.mxu0 %v253
      %277 = vmatprep.subr.bf16.mxu0 0
      %278 = vmatpush1.bf16.msra.mxu0 %v254
      %279 = vmatprep.subr.bf16.mxu0 0
      %280 = vmatpush1.bf16.msra.mxu0 0
      %281 = vmatprep.subr.bf16.mxu0 0
      %282 = vmatpush1.bf16.msra.mxu0 0
      %283 = vmatprep.subr.bf16.mxu0 0
      %284 = vmatpush1.bf16.msra.mxu0 0
      %285 = vmatprep.subr.bf16.mxu0 0
      %286 = vmatpush1.bf16.msra.mxu0 0
      %287 = vmatprep.subr.bf16.mxu0 0
      %288 = vmatpush1.bf16.msra.mxu0 0
      %289 = vmatprep.subr.bf16.mxu0 0
      %290 = vmatpush1.bf16.msra.mxu0 0
      %291 = vmatprep.subr.bf16.mxu0 0
      %292 = vmatpush1.bf16.msra.mxu0 0
      %293 = vmatprep.subr.bf16.mxu0 0
      %294 = vmatpush1.bf16.msra.mxu0 0
      %295 = vmatprep.mubr.bf16.mxu0 0
      %296 = vmatmul.mubr.bf16.gmra.mrb[0].mxu0 %v190
      %v297 = vpop.f32.mrb[0].mxu0
      %v298 = vadd.f32 %v213, %v297
      %v299 = vpop.f32.mrb[0].mxu0
      %v300 = vpop.f32.mrb[0].mxu0
      %v301 = vpop.f32.mrb[0].mxu0
      %302 = vdwg.mxu0
      %303 = vst [vmem:[%s8] sm:$0xff] %v298
    $region45: #{_fwd.1} parent=1 // pred_fallthru
      _
    %v304 = vld [vmem:[#allocation2] sm:$0xf]
    %v305 = vld [vmem:[#allocation5] sm:$0xf]
    %v306 = vld [vmem:[#allocation5 + $0x4] sm:$0xf]
    %v307 = vld [vmem:[#allocation5 + $0x8] sm:$0xf]
    %v308 = vld [vmem:[#allocation5 + $0xc] sm:$0xf]
    %v309 = vld [vmem:[#allocation5 + $0x10] sm:$0xf]
    %v310 = vld [vmem:[#allocation5 + $0x14] sm:$0xf]
    %v311 = vld [vmem:[#allocation5 + $0x18] sm:$0xf]
    %v312 = vld [vmem:[#allocation5 + $0x1c] sm:$0xf]
    %v313 = vld [vmem:[#allocation5 + $0x20] sm:$0xf]
    %v314 = vld [vmem:[#allocation5 + $0x24] sm:$0xf]
    %v315 = vld [vmem:[#allocation5 + $0x28] sm:$0xf]
    %v316 = vld [vmem:[#allocation5 + $0x2c] sm:$0xf]
    %v317 = vld [vmem:[#allocation5 + $0x30] sm:$0xf]
    %v318 = vld [vmem:[#allocation5 + $0x34] sm:$0xf]
    %v319 = vld [vmem:[#allocation5 + $0x38] sm:$0xf]
    %v320 = vld [vmem:[#allocation5 + $0x3c] sm:$0xf]
    %v321 = vld [vmem:[%s4] sm:$0x1]
    %v323 = vlaneseq
    %v324 = vshrl.u32 %v323, 7
    %v325 = vsub.s32 0, %v324
    %v326 = vrot.slane %v321, %v325
    %v344 = vunpack.c.l.b16 %v305
    %v345 = vunpack.c.l.b16 %v306
    %v346 = vunpack.c.l.b16 %v307
    %v347 = vunpack.c.l.b16 %v308
    %v348 = vunpack.c.l.b16 %v309
    %v349 = vunpack.c.l.b16 %v310
    %v350 = vunpack.c.l.b16 %v311
    %v351 = vunpack.c.l.b16 %v312
    %v352 = vunpack.c.l.b16 %v313
    %v353 = vunpack.c.l.b16 %v314
    %v354 = vunpack.c.l.b16 %v315
    %v355 = vunpack.c.l.b16 %v316
    %v356 = vunpack.c.l.b16 %v317
    %v357 = vunpack.c.l.b16 %v318
    %v358 = vunpack.c.l.b16 %v319
    %v359 = vunpack.c.l.b16 %v320
    %v360 = vpack.c.b16 %v345, %v344
    %v361 = vpack.c.b16 %v347, %v346
    %v362 = vpack.c.b16 %v349, %v348
    %v363 = vpack.c.b16 %v351, %v350
    %v364 = vpack.c.b16 %v353, %v352
    %v365 = vpack.c.b16 %v355, %v354
    %v366 = vpack.c.b16 %v357, %v356
    %v367 = vpack.c.b16 %v359, %v358
    %376 = vmatprep.subr.bf16.mxu0 0
    %377 = vmatpush1.bf16.msra.mxu0 %v360
    %378 = vmatprep.subr.bf16.mxu0 0
    %379 = vmatpush1.bf16.msra.mxu0 %v361
    %380 = vmatprep.subr.bf16.mxu0 0
    %381 = vmatpush1.bf16.msra.mxu0 %v362
    %382 = vmatprep.subr.bf16.mxu0 0
    %383 = vmatpush1.bf16.msra.mxu0 %v363
    %384 = vmatprep.subr.bf16.mxu0 0
    %385 = vmatpush1.bf16.msra.mxu0 %v364
    %386 = vmatprep.subr.bf16.mxu0 0
    %387 = vmatpush1.bf16.msra.mxu0 %v365
    %388 = vmatprep.subr.bf16.mxu0 0
    %389 = vmatpush1.bf16.msra.mxu0 %v366
    %390 = vmatprep.subr.bf16.mxu0 0
    %391 = vmatpush1.bf16.msra.mxu0 %v367
    %392 = vmatprep.subr.bf16.mxu0 0
    %393 = vmatpush1.bf16.msra.mxu0 0
    %394 = vmatprep.subr.bf16.mxu0 0
    %395 = vmatpush1.bf16.msra.mxu0 0
    %396 = vmatprep.subr.bf16.mxu0 0
    %397 = vmatpush1.bf16.msra.mxu0 0
    %398 = vmatprep.subr.bf16.mxu0 0
    %399 = vmatpush1.bf16.msra.mxu0 0
    %400 = vmatprep.subr.bf16.mxu0 0
    %401 = vmatpush1.bf16.msra.mxu0 0
    %402 = vmatprep.subr.bf16.mxu0 0
    %403 = vmatpush1.bf16.msra.mxu0 0
    %404 = vmatprep.subr.bf16.mxu0 0
    %405 = vmatpush1.bf16.msra.mxu0 0
    %406 = vmatprep.subr.bf16.mxu0 0
    %407 = vmatpush1.bf16.msra.mxu0 0
    %408 = vmatprep.mubr.bf16.mxu0 0
    %409 = vmatmul.mubr.bf16.gmra.mrb[0].mxu0 %v304
    %v410 = vpop.f32.mrb[0].mxu0
    %v411 = vadd.f32 %v326, %v410
    %v412 = vpop.f32.mrb[0].mxu0
    %v413 = vpop.f32.mrb[0].mxu0
    %v414 = vpop.f32.mrb[0].mxu0
    %415 = vdwg.mxu0
    %416 = vst [vmem:[%s7] sm:$0xff] %v411
    // Predicated region
    $region46: #{_fwd.1} parent=1 // pred_check
      _
    $region47: #{_fwd.1} parent=1 // pred_check_branch
      %418 = sbr.rel (0) target = $region49
    $region48: #{_fwd.1} parent=1 // pred_region
      _
    $region49: #{_fwd.1} parent=1 // pred_fallthru
      _
    // Predicated region
    $region50: #{_fwd.1} parent=1 // pred_check
      _
    $region51: #{_fwd.1} parent=1 // pred_check_branch
      %420 = sbr.rel (0) target = $region53
    $region52: #{_fwd.1} parent=1 // pred_region
      _
    $region53: #{_fwd.1} parent=1 // pred_fallthru
      _
    // Predicated region
    $region54: #{_fwd.1} parent=1 // pred_check
      _
    $region55: #{_fwd.1} parent=1 // pred_check_branch
      %422 = sbr.rel (0) target = $region57
    $region56: #{_fwd.1} parent=1 // pred_region
      _
    $region57: #{_fwd.1} parent=1 // pred_fallthru
      _
    // Predicated region
    $region58: #{_fwd.1} parent=1 // pred_check
      _
    $region59: #{_fwd.1} parent=1 // pred_check_branch
      %424 = sbr.rel (0) target = $region61
    $region60: #{_fwd.1} parent=1 // pred_region
      _
    $region61: #{_fwd.1} parent=1 // pred_fallthru
      _
    // Predicated region
    $region62: #{_fwd.1} parent=1 // pred_check
      _
    $region63: #{_fwd.1} parent=1 // pred_check_branch
      %426 = sbr.rel (0) target = $region65
    $region64: #{_fwd.1} parent=1 // pred_region
      _
    $region65: #{_fwd.1} parent=1 // pred_fallthru
      _
    // Predicated region
    $region66: #{_fwd.1} parent=1 // pred_check
      _
    $region67: #{_fwd.1} parent=1 // pred_check_branch
      %428 = sbr.rel (0) target = $region69
    $region68: #{_fwd.1} parent=1 // pred_region
      _
    $region69: #{_fwd.1} parent=1 // pred_fallthru
      _
    %429 = vsyncpa [#allocation4], 1
    %430 = vsyncpa [#allocation6], 1

</llo_original>
